<compile_context>
chip_gen: v6e
topology: v6e:2x2x1
jax: 0.10.0
libtpu: 0.0.40
codegen_flags: <defaults>
</compile_context>

<pallas_src>
import jax
import jax.numpy as jnp
from jax.experimental import pallas as pl
from jax.experimental.pallas import tpu as pltpu


def _round_up(x, m):
    return ((x + m - 1) // m) * m


def _choose_tm(M, D, itemsize):
    """Row tile: largest tile whose double-buffered A/B/out tiles plus the
    in-kernel f32 temporaries stay well inside the 32 MiB scoped VMEM budget,
    while keeping >= 4 pipelined grid steps when M permits (>= 2 per
    TensorCore on v7x)."""
    gran = max(8, 32 // itemsize)               # 8 (f32), 16 (bf16), 32 (int8/fp8)
    budget = 20 << 20                           # headroom under 32 MiB scoped VMEM
    per_row = 6 * D * itemsize + 2 * D * 4      # 2x-buffered A/B/out + f32 temps
    tm_cap = max(gran, min(int(budget // per_row), 1024))
    tm_cap -= tm_cap % gran
    tm_cap = max(gran, tm_cap)

    if M >= 4 * tm_cap:                         # big problem: max tile, >= 4 steps
        return tm_cap
    quarter = _round_up(pl.cdiv(M, 4), gran)    # aim for ~4 pipelined steps
    return max(gran, min(tm_cap, quarter))


def gate_kernel(a_ref, b_ref, w_ref, bias_ref, o_ref):
    a = a_ref[...]                              # (tm, D), input dtype
    b = b_ref[...]                              # (tm, D)
    w = w_ref[...]                              # (2, D) f32, resident across grid
    bias = bias_ref[0]                          # scalar f32 from SMEM

    wa = w[0:1, :]                              # (1, D)
    wb = w[1:2, :]                              # (1, D)

    if a.dtype == jnp.float32:
        prod = a * wa + b * wb                  # f32 VPU
    else:
        # bf16/fp16: keep the elementwise work in the input dtype
        # (native on v6e/v7x VPUs); only accumulate in f32.
        prod = a * wa.astype(a.dtype) + b * wb.astype(a.dtype)

    # Per-row cross-lane reduction (XLU), accumulate in f32; sigmoid on EUP.
    logit = jnp.sum(prod.astype(jnp.float32), axis=-1, keepdims=True) + bias
    gate = jax.nn.sigmoid(logit)                # (tm, 1) f32

    # Blend in the input dtype: out = B + gate * (A - B)
    g = gate.astype(a.dtype)
    o_ref[...] = (b + g * (a - b)).astype(o_ref.dtype)


def gate_mechanism(input_a, input_b, weight, bias):
    """input_a, input_b: (..., D). weight: (1, 2D). bias: (1,)."""
    orig_shape = input_a.shape
    D = orig_shape[-1]
    assert input_b.shape == orig_shape
    assert weight.shape == (1, 2 * D)
    # NOTE: D < 128 would make the output lane-sparse (masked stores). The
    # module uses D = 1024 (lane-dense); the kernel is correct for any D.

    a2 = input_a.reshape(-1, D)
    b2 = input_b.reshape(-1, D)
    M = a2.shape[0]
    itemsize = jnp.dtype(a2.dtype).itemsize

    tm = _choose_tm(M, D, itemsize)
    grid = (pl.cdiv(M, tm),)                    # ragged last block handled by Pallas

    # Resident weight: row 0 = wA, row 1 = wB (weight is (1, 2D) row-major).
    w2 = weight.reshape(2, D).astype(jnp.float32)
    bias_f32 = bias.reshape(1).astype(jnp.float32)

    out = pl.pallas_call(
        gate_kernel,
        out_shape=jax.ShapeDtypeStruct((M, D), input_a.dtype),
        grid_spec=pltpu.PrefetchScalarGridSpec(
            num_scalar_prefetch=0,
            grid=grid,
            in_specs=[
                pl.BlockSpec((tm, D), lambda i: (i, 0)),            # A tile
                pl.BlockSpec((tm, D), lambda i: (i, 0)),            # B tile
                pl.BlockSpec((2, D), lambda i: (0, 0)),             # weight (resident)
                pl.BlockSpec(memory_space=pltpu.MemorySpace.SMEM),  # bias scalar
            ],
            out_specs=pl.BlockSpec((tm, D), lambda i: (i, 0)),
        ),
        compiler_params=pltpu.CompilerParams(
            dimension_semantics=("parallel",),
            vmem_limit_bytes=32 * 1024 * 1024,
        ),
    )(a2, b2, w2, bias_f32)

    return out.reshape(orig_shape)


def gate_mechanism_ref(input_a, input_b, weight, bias):
    combined = jnp.concatenate([input_a, input_b], axis=-1)
    logit = jnp.einsum("...k,ok->...o", combined, weight,
                       precision=jax.lax.Precision.HIGHEST) + bias
    gate = jax.nn.sigmoid(logit)
    return gate * input_a + (1.0 - gate) * input_b


if __name__ == "__main__":
    key = jax.random.PRNGKey(0)
    k_a, k_b, k_w, k_bias = jax.random.split(key, 4)

    # (batch, prompt positions, input_dim) — the module builds GateMechanism(1024).
    B, P, D = 2, 5, 1024
    input_a = jax.random.normal(k_a, (B, P, D), dtype=jnp.float32)
    input_b = jax.random.normal(k_b, (B, P, D), dtype=jnp.float32)

    # Deterministic parameter init matching nn.Linear(input_dim*2, 1) shapes.
    bound = 1.0 / jnp.sqrt(2.0 * D)
    weight = jax.random.uniform(k_w, (1, 2 * D), minval=-bound, maxval=bound,
                                dtype=jnp.float32)
    bias = jax.random.uniform(k_bias, (1,), minval=-bound, maxval=bound,
                              dtype=jnp.float32)

    # M = B*P = 10 is not a multiple of the 8-row tile -> exercises the
    # ragged last block (no host-side padding).
    out = gate_mechanism(input_a, input_b, weight, bias)
    out = jax.block_until_ready(out)

    ref = gate_mechanism_ref(input_a, input_b, weight, bias)
    assert out.shape == (B, P, D)
    assert jnp.allclose(out, ref, atol=1e-5, rtol=1e-5), "mismatch vs reference"

    print("KERNEL_OK")
</pallas_src>

<mosaic_0001>
module attributes {stable_mosaic.version = 11 : i64} {
  func.func @gate_kernel(%arg0: i32, %arg1: memref<8x1024xf32, #tpu.memory_space<vmem>>, %arg2: memref<8x1024xf32, #tpu.memory_space<vmem>>, %arg3: memref<2x1024xf32, #tpu.memory_space<vmem>>, %arg4: memref<1xf32, #tpu.memory_space<smem>>, %arg5: memref<8x1024xf32, #tpu.memory_space<vmem>>) attributes {dimension_semantics = [#tpu.dimension_semantics<parallel>], iteration_bounds = array<i64: 2>, scalar_prefetch = 0 : i64, scratch_operands = 0 : i64, tpu.core_type = #tpu.core_type<tc>, window_params = [{transform_indices = @transform_0, window_bounds = array<i64: 8, 1024>}, {transform_indices = @transform_1, window_bounds = array<i64: 8, 1024>}, {pipeline_mode = #tpu.pipeline_mode<synchronous>, transform_indices = @transform_2, window_bounds = array<i64: 2, 1024>}, {transform_indices = @transform_3, window_bounds = array<i64: 1>}, {transform_indices = @transform_4, window_bounds = array<i64: 8, 1024>}]} {
    %c0 = arith.constant 0 : index
    %c0_0 = arith.constant 0 : index
    %0 = vector.load %arg1[%c0, %c0_0] : memref<8x1024xf32, #tpu.memory_space<vmem>>, vector<8x1024xf32>
    %c0_1 = arith.constant 0 : index
    %c0_2 = arith.constant 0 : index
    %1 = vector.load %arg2[%c0_1, %c0_2] : memref<8x1024xf32, #tpu.memory_space<vmem>>, vector<8x1024xf32>
    %c0_3 = arith.constant 0 : index
    %c0_4 = arith.constant 0 : index
    %2 = vector.load %arg3[%c0_3, %c0_4] : memref<2x1024xf32, #tpu.memory_space<vmem>>, vector<2x1024xf32>
    %c0_5 = arith.constant 0 : index
    %3 = memref.load %arg4[%c0_5] : memref<1xf32, #tpu.memory_space<smem>>
    %4 = vector.extract_strided_slice %2 {offsets = [0, 0], sizes = [1, 1024], strides = [1, 1]} : vector<2x1024xf32> to vector<1x1024xf32>
    %5 = vector.extract_strided_slice %2 {offsets = [1, 0], sizes = [1, 1024], strides = [1, 1]} : vector<2x1024xf32> to vector<1x1024xf32>
    %6 = vector.broadcast %4 : vector<1x1024xf32> to vector<8x1024xf32>
    %7 = arith.mulf %0, %6 : vector<8x1024xf32>
    %8 = vector.broadcast %5 : vector<1x1024xf32> to vector<8x1024xf32>
    %9 = arith.mulf %1, %8 : vector<8x1024xf32>
    %10 = arith.addf %7, %9 : vector<8x1024xf32>
    %cst = arith.constant dense<0.000000e+00> : vector<8xf32>
    %11 = vector.multi_reduction <add>, %10, %cst [1] : vector<8x1024xf32> to vector<8xf32>
    %12 = vector.shape_cast %11 : vector<8xf32> to vector<8x1xf32>
    %13 = vector.broadcast %3 : f32 to vector<8x1xf32>
    %14 = arith.addf %12, %13 : vector<8x1xf32>
    %15 = arith.negf %14 : vector<8x1xf32>
    %16 = math.exp %15 : vector<8x1xf32>
    %cst_6 = arith.constant 1.000000e+00 : f32
    %17 = vector.broadcast %cst_6 : f32 to vector<8x1xf32>
    %18 = arith.addf %17, %16 : vector<8x1xf32>
    %19 = arith.divf %17, %18 : vector<8x1xf32>
    %20 = arith.subf %0, %1 : vector<8x1024xf32>
    %21 = vector.broadcast %19 : vector<8x1xf32> to vector<8x1024xf32>
    %22 = arith.mulf %21, %20 : vector<8x1024xf32>
    %23 = arith.addf %1, %22 : vector<8x1024xf32>
    %c0_7 = arith.constant 0 : index
    %c0_8 = arith.constant 0 : index
    %24 = vector.load %arg5[%c0_7, %c0_8] : memref<8x1024xf32, #tpu.memory_space<vmem>>, vector<8x1024xf32>
    tpu.vector_store %arg5[%c0_7, %c0_8], %23 {strides = array<i32>} : memref<8x1024xf32, #tpu.memory_space<vmem>>, vector<8x1024xf32>,
    return
  }
  func.func @transform_0(%arg0: i32) -> (i32, i32) {
    %c0_i32 = arith.constant 0 : i32
    %c0_i32_0 = arith.constant 0 : i32
    return %arg0, %c0_i32 : i32, i32
  }
  func.func @transform_1(%arg0: i32) -> (i32, i32) {
    %c0_i32 = arith.constant 0 : i32
    %c0_i32_0 = arith.constant 0 : i32
    return %arg0, %c0_i32 : i32, i32
  }
  func.func @transform_2(%arg0: i32) -> (i32, i32) {
    %c0_i32 = arith.constant 0 : i32
    %c0_i32_0 = arith.constant 0 : i32
    %c0_i32_1 = arith.constant 0 : i32
    return %c0_i32, %c0_i32_0 : i32, i32
  }
  func.func @transform_3(%arg0: i32) -> i32 {
    %c0_i32 = arith.constant 0 : i32
    %c0_i32_0 = arith.constant 0 : i32
    return %c0_i32 : i32
  }
  func.func @transform_4(%arg0: i32) -> (i32, i32) {
    %c0_i32 = arith.constant 0 : i32
    %c0_i32_0 = arith.constant 0 : i32
    return %arg0, %c0_i32 : i32, i32
  }
}

</mosaic_0001>

<llo_original>
// kernel: tpu_custom_call.1
$region0: #{tpu_custom_call.1}
  #allocation0 [shape = 'u32[]', space=smem, size = 0x4, offset = 0x4, fixed_abs, tag = 'smem constant byte address 0x4 - core index']
  #allocation1 [shape = 'u32[144,128]{1,0:T(1,128)}', space=vmem, size = 0x12000, scoped, tag = 'internal scratch']
  #allocation2 [shape = 'f32[1]{0:T(128)S(6)}', space=smem, size = 0x200, scoped, tag = 'scoped memory for tpu_custom_call.1']
  %s0 = inlined_call_operand.hbm [shape: f32[10,1024], index: 0, kind: input, shape index: {}]
  %s1 = inlined_call_operand.hbm [shape: f32[10,1024], index: 1, kind: input, shape index: {}]
  %s2 = inlined_call_operand.hbm [shape: f32[2,1024], index: 2, kind: input, shape index: {}]
  %s3 = inlined_call_operand.<no memory space> [shape: f32[1], index: 3, kind: input, shape index: {}]
  %s4 = inlined_call_operand.hbm [shape: f32[10,1024], index: 4, kind: output, shape index: {}]
  %s5 = sld [smem:[#allocation0]]
  $region61: #{tpu_custom_call.1} parent=0
    _
  %s7 = ssub.s32 1, %s5
  %s8 = scalar_select 0, %s7, %s5
  %9 = sst [smem:[#allocation2]] %s3
  $region1: #{tpu_custom_call.1} parent=0
    #allocation3 [shape = 'u8[65536]{0}', space=vmem, size = 0x10000, scoped, tag = 'input window, operand 0']
    #allocation4 [shape = 's32[2]{0}', space=sflag, size = 0x8, scoped, tag = 'scoped memory for tpu_custom_call.1']
    #allocation5 [shape = 's32[2]{0}', space=sflag, size = 0x8, scoped, tag = 'scoped memory for tpu_custom_call.1']
    #allocation6 [shape = 'u8[65536]{0}', space=vmem, size = 0x10000, scoped, tag = 'input window, operand 1']
    #allocation7 [shape = 's32[2]{0}', space=sflag, size = 0x8, scoped, tag = 'scoped memory for tpu_custom_call.1']
    #allocation8 [shape = 'u8[8192]{0}', space=vmem, size = 0x2000, scoped, tag = 'input window, operand 2, single buffered']
    #allocation9 [shape = 'u8[65536]{0}', space=vmem, size = 0x10000, scoped, tag = 'output window, operand 0']
    %10 = vsyncpa [#allocation4], 0
    %s11 = scalar_lea.sflag [#allocation4], 1
    %12 = vsyncpa %s11, 0
    %13 = vsyncpa [#allocation7], 0
    %s14 = scalar_lea.sflag [#allocation7], 1
    %15 = vsyncpa %s14, 0
    %16 = vsyncpa [#allocation5], 0
    %s17 = scalar_lea.sflag [#allocation5], 1
    %18 = vsyncpa %s17, 0
    loop: start=0, step=1, limit=4
    $region2: #{tpu_custom_call.1} parent=1 // loop_pre_header
      _
    $region3: #{tpu_custom_call.1} parent=1 // loop_header
      %s20 = sphi 0, %s24
      %p21 = scmp.ge.s32.totalorder %s20, 4
      %s30 = sphi 0, %s32
      %s33 = sphi 0, %s30
      %s34 = sphi 0, %s33
      %s50 = sphi 0, %s34
      %s56 = sphi 0, %s58
      %s59 = sphi 0, %s56
      %s60 = sphi 0, %s59
      %s76 = sphi 0, %s60
      %s80 = sphi 0, %s80
      %s82 = sphi 0, %s80
      %s83 = sphi 0, %s82
      %s97 = sphi 0, %s83
      %s101 = sphi 0, %s101
      %s103 = sphi 0, %s101
      %s104 = sphi 0, %s103
      %s118 = sphi 0, %s104
      %s124 = sphi 0, %s126
      %s127 = sphi 0, %s124
      %s128 = sphi 0, %s127
      %s144 = sphi 0, %s128
    $region4: #{tpu_custom_call.1} parent=1 // loop_header_branch
      %23 = sbr.rel (%p21) target = $region8
    $region5: #{tpu_custom_call.1} parent=1 // loop_body
      %s25 = ssub.s32 %s20, 1
      %s26 = ssub.s32 %s20, 2
      %s27 = sadd.s32 %s20, 1
      %s28 = ssub.s32 %s20, %s27
      %p29 = scmp.eq.s32.totalorder %s28, 0
      %s31 = sadd.s32 %s30, 1
      %s32 = scalar_select %p29, %s30, %s31
      %p35 = pneg %p29
      %p36 = scmp.eq.s32.totalorder %s20, 1
      %p37 = por %p35, %p36
      %p38 = scmp.ne.s32.totalorder %s30, %s33
      %p39 = scmp.eq.s32.totalorder %s20, 0
      %p40 = por %p38, %p39
      %p41 = scmp.ne.s32.totalorder %s30, %s33
      %p42 = scmp.eq.s32.totalorder %s25, 1
      %p43 = por %p41, %p42
      %p44 = scmp.ne.s32.totalorder %s33, %s34
      %p45 = scmp.eq.s32.totalorder %s25, 0
      %p46 = por %p44, %p45
      %p47 = scmp.ne.s32.totalorder %s33, %s34
      %p48 = scmp.eq.s32.totalorder %s26, 1
      %p49 = por %p47, %p48
      %p51 = scmp.ne.s32.totalorder %s34, %s50
      %p52 = scmp.eq.s32.totalorder %s26, 0
      %p53 = por %p51, %p52
      %s54 = ssub.s32 %s20, %s27
      %p55 = scmp.eq.s32.totalorder %s54, 0
      %s57 = sadd.s32 %s56, 1
      %s58 = scalar_select %p55, %s56, %s57
      %p61 = pneg %p55
      %p62 = scmp.eq.s32.totalorder %s20, 1
      %p63 = por %p61, %p62
      %p64 = scmp.ne.s32.totalorder %s56, %s59
      %p65 = scmp.eq.s32.totalorder %s20, 0
      %p66 = por %p64, %p65
      %p67 = scmp.ne.s32.totalorder %s56, %s59
      %p68 = scmp.eq.s32.totalorder %s25, 1
      %p69 = por %p67, %p68
      %p70 = scmp.ne.s32.totalorder %s59, %s60
      %p71 = scmp.eq.s32.totalorder %s25, 0
      %p72 = por %p70, %p71
      %p73 = scmp.ne.s32.totalorder %s59, %s60
      %p74 = scmp.eq.s32.totalorder %s26, 1
      %p75 = por %p73, %p74
      %p77 = scmp.ne.s32.totalorder %s60, %s76
      %p78 = scmp.eq.s32.totalorder %s26, 0
      %p79 = por %p77, %p78
      %s81 = sadd.s32 %s80, 1
      %p84 = scmp.eq.s32.totalorder %s20, 1
      %p85 = scmp.ne.s32.totalorder %s80, %s82
      %p86 = scmp.eq.s32.totalorder %s20, 0
      %p87 = por %p85, %p86
      %p88 = scmp.ne.s32.totalorder %s80, %s82
      %p89 = scmp.eq.s32.totalorder %s25, 1
      %p90 = por %p88, %p89
      %p91 = scmp.ne.s32.totalorder %s82, %s83
      %p92 = scmp.eq.s32.totalorder %s25, 0
      %p93 = por %p91, %p92
      %p94 = scmp.ne.s32.totalorder %s82, %s83
      %p95 = scmp.eq.s32.totalorder %s26, 1
      %p96 = por %p94, %p95
      %p98 = scmp.ne.s32.totalorder %s83, %s97
      %p99 = scmp.eq.s32.totalorder %s26, 0
      %p100 = por %p98, %p99
      %s102 = sadd.s32 %s101, 1
      %p105 = scmp.eq.s32.totalorder %s20, 1
      %p106 = scmp.ne.s32.totalorder %s101, %s103
      %p107 = scmp.eq.s32.totalorder %s20, 0
      %p108 = por %p106, %p107
      %p109 = scmp.ne.s32.totalorder %s101, %s103
      %p110 = scmp.eq.s32.totalorder %s25, 1
      %p111 = por %p109, %p110
      %p112 = scmp.ne.s32.totalorder %s103, %s104
      %p113 = scmp.eq.s32.totalorder %s25, 0
      %p114 = por %p112, %p113
      %p115 = scmp.ne.s32.totalorder %s103, %s104
      %p116 = scmp.eq.s32.totalorder %s26, 1
      %p117 = por %p115, %p116
      %p119 = scmp.ne.s32.totalorder %s104, %s118
      %p120 = scmp.eq.s32.totalorder %s26, 0
      %p121 = por %p119, %p120
      %s122 = ssub.s32 %s20, %s27
      %p123 = scmp.eq.s32.totalorder %s122, 0
      %s125 = sadd.s32 %s124, 1
      %s126 = scalar_select %p123, %s124, %s125
      %p129 = pneg %p123
      %p130 = scmp.eq.s32.totalorder %s20, 1
      %p131 = por %p129, %p130
      %p132 = scmp.ne.s32.totalorder %s124, %s127
      %p133 = scmp.eq.s32.totalorder %s20, 0
      %p134 = por %p132, %p133
      %p135 = scmp.ne.s32.totalorder %s124, %s127
      %p136 = scmp.eq.s32.totalorder %s25, 1
      %p137 = por %p135, %p136
      %p138 = scmp.ne.s32.totalorder %s127, %s128
      %p139 = scmp.eq.s32.totalorder %s25, 0
      %p140 = por %p138, %p139
      %p141 = scmp.ne.s32.totalorder %s127, %s128
      %p142 = scmp.eq.s32.totalorder %s26, 1
      %p143 = por %p141, %p142
      %p145 = scmp.ne.s32.totalorder %s128, %s144
      %p146 = scmp.eq.s32.totalorder %s26, 0
      %p147 = por %p145, %p146
      %p148 = scmp.le.s32.totalorder 1, %s20
      %p149 = scmp.lt.s32.totalorder %s20, 3
      %p150 = pnand %p148, %p149
      %p151 = pneg %p150
      // Predicated region
      $region9: #{tpu_custom_call.1} parent=5 // pred_check
        _
      $region10: #{tpu_custom_call.1} parent=5 // pred_check_branch
        %153 = sbr.rel (%p150) target = $region12
      $region11: #{tpu_custom_call.1} parent=5 // pred_region
        %s154 = ssub.s32 %s20, 1
        // Predicated region
        $region13: #{tpu_custom_call.1} parent=11 // pred_check
          %p155 = pneg %p93
        $region14: #{tpu_custom_call.1} parent=11 // pred_check_branch
          %157 = sbr.rel (%p155) target = $region16
        $region15: #{tpu_custom_call.1} parent=11 // pred_region
          %s159 = ssub.s32 256, 256
          %160 = vsyncadd [#allocation7], %s159
          %s162 = sshll.u32 [#allocation8], 4
          %s163 = int_to_ptr.vmem [resolvable:$true] %s162
          %165 = dma.hbm_to_vmem [thread:$0]  %s2, 256, %s163, [#allocation7]
        $region16: #{tpu_custom_call.1} parent=11 // pred_fallthru
          _
        // Predicated region
        $region17: #{tpu_custom_call.1} parent=11 // pred_check
          %p166 = pneg %p114
        $region18: #{tpu_custom_call.1} parent=11 // pred_check_branch
          %168 = sbr.rel (%p166) target = $region20
        $region19: #{tpu_custom_call.1} parent=11 // pred_region
          _
        $region20: #{tpu_custom_call.1} parent=11 // pred_fallthru
          _
      $region12: #{tpu_custom_call.1} parent=5 // pred_fallthru
        _
      %p169 = scmp.lt.s32.totalorder %s20, 2
      // Predicated region
      $region21: #{tpu_custom_call.1} parent=5 // pred_check
        %p170 = pneg %p169
      $region22: #{tpu_custom_call.1} parent=5 // pred_check_branch
        %172 = sbr.rel (%p170) target = $region24
      $region23: #{tpu_custom_call.1} parent=5 // pred_region
        // Predicated region
        $region25: #{tpu_custom_call.1} parent=23 // pred_check
          %p173 = pneg %p40
        $region26: #{tpu_custom_call.1} parent=23 // pred_check_branch
          %175 = sbr.rel (%p173) target = $region28
        $region27: #{tpu_custom_call.1} parent=23 // pred_region
          %s176 = sand.u32 %s30, 1
          %s177 = scalar_lea.sflag [#allocation4], %s176
          %s178 = sand.u32 %s30, 1
          %s179 = smul.addr %s178, 64
          %s180 = scalar_lea.vmem [#allocation3], %s179
          %s182 = ssub.s32 1024, 1024
          %183 = vsyncadd %s177, %s182
          %s184 = smul.addr %s20, 8
          %s185 = smul.addr %s184, 128
          %s186 = scalar_lea.hbm %s0, %s185
          %s188 = sshll.u32 %s180, 4
          %s189 = int_to_ptr.vmem [resolvable:$true] %s188
          %191 = dma.hbm_to_vmem [thread:$0]  %s186, 1024, %s189, %s177
        $region28: #{tpu_custom_call.1} parent=23 // pred_fallthru
          _
        // Predicated region
        $region29: #{tpu_custom_call.1} parent=23 // pred_check
          %p192 = pneg %p66
        $region30: #{tpu_custom_call.1} parent=23 // pred_check_branch
          %194 = sbr.rel (%p192) target = $region32
        $region31: #{tpu_custom_call.1} parent=23 // pred_region
          %s195 = sand.u32 %s20, 1
          %s196 = scalar_lea.sflag [#allocation7], %s195
          %s197 = sand.u32 %s56, 1
          %s198 = smul.addr %s197, 64
          %s199 = scalar_lea.vmem [#allocation6], %s198
          %s201 = ssub.s32 1024, 1024
          %202 = vsyncadd %s196, %s201
          %s203 = smul.addr %s20, 8
          %s204 = smul.addr %s203, 128
          %s205 = scalar_lea.hbm %s1, %s204
          %s207 = sshll.u32 %s199, 4
          %s208 = int_to_ptr.vmem [resolvable:$true] %s207
          %210 = dma.hbm_to_vmem [thread:$0]  %s205, 1024, %s208, %s196
        $region32: #{tpu_custom_call.1} parent=23 // pred_fallthru
          _
      $region24: #{tpu_custom_call.1} parent=5 // pred_fallthru
        _
      %p211 = scmp.le.s32.totalorder 1, %s20
      %p212 = scmp.lt.s32.totalorder %s20, 3
      %p213 = pnand %p211, %p212
      %p214 = pneg %p213
      // Predicated region
      $region33: #{tpu_custom_call.1} parent=5 // pred_check
        _
      $region34: #{tpu_custom_call.1} parent=5 // pred_check_branch
        %216 = sbr.rel (%p213) target = $region36
      $region35: #{tpu_custom_call.1} parent=5 // pred_region
        %s217 = ssub.s32 %s20, 1
        %s218 = sand.u32 %s33, 1
        %s219 = scalar_lea.sflag [#allocation4], %s218
        %s220 = sand.u32 %s33, 1
        %s221 = smul.addr %s220, 64
        %s222 = scalar_lea.vmem [#allocation3], %s221
        // Predicated region
        $region37: #{tpu_custom_call.1} parent=35 // pred_check
          %p223 = pneg %p46
        $region38: #{tpu_custom_call.1} parent=35 // pred_check_branch
          %225 = sbr.rel (%p223) target = $region40
        $region39: #{tpu_custom_call.1} parent=35 // pred_region
          %226 = dma.done %s219, 1024
        $region40: #{tpu_custom_call.1} parent=35 // pred_fallthru
          _
        %s227 = sand.u32 %s25, 1
        %s228 = scalar_lea.sflag [#allocation7], %s227
        %s229 = sand.u32 %s59, 1
        %s230 = smul.addr %s229, 64
        %s231 = scalar_lea.vmem [#allocation6], %s230
        // Predicated region
        $region41: #{tpu_custom_call.1} parent=35 // pred_check
          %p232 = pneg %p72
        $region42: #{tpu_custom_call.1} parent=35 // pred_check_branch
          %234 = sbr.rel (%p232) target = $region44
        $region43: #{tpu_custom_call.1} parent=35 // pred_region
          %235 = dma.done %s228, 1024
        $region44: #{tpu_custom_call.1} parent=35 // pred_fallthru
          _
        // Predicated region
        $region45: #{tpu_custom_call.1} parent=35 // pred_check
          %p236 = pneg %p93
        $region46: #{tpu_custom_call.1} parent=35 // pred_check_branch
          %238 = sbr.rel (%p236) target = $region48
        $region47: #{tpu_custom_call.1} parent=35 // pred_region
          %239 = dma.done [#allocation7], 256
        $region48: #{tpu_custom_call.1} parent=35 // pred_fallthru
          _
        %s240 = sand.u32 %s33, 1
        %s241 = scalar_lea.sflag [#allocation4], %s240
        %s242 = sand.u32 %s33, 1
        %s243 = smul.addr %s242, 64
        %s244 = scalar_lea.vmem [#allocation3], %s243
        %p245 = pneg %p46
        %p246 = pneg %p43
        %s247 = sand.u32 %s25, 1
        %s248 = scalar_lea.sflag [#allocation7], %s247
        %s249 = sand.u32 %s59, 1
        %s250 = smul.addr %s249, 64
        %s251 = scalar_lea.vmem [#allocation6], %s250
        %p252 = pneg %p72
        %p253 = pneg %p69
        %p254 = pneg %p93
        %p255 = pneg %p90
        %p256 = pneg %p114
        %p257 = pneg %p111
        %p258 = pneg %p140
        %p259 = pneg %p137
        %s260 = sand.u32 %s127, 1
        %s261 = scalar_lea.sflag [#allocation5], %s260
        %s262 = sand.u32 %s127, 1
        %s263 = smul.addr %s262, 64
        %s264 = scalar_lea.vmem [#allocation9], %s263
        %v265 = vld [vmem:[%s222] sm:$0xff]
        %v266 = vld [vmem:[%s222 + $0x8] sm:$0xff]
        %v267 = vld [vmem:[%s222 + $0x10] sm:$0xff]
        %v268 = vld [vmem:[%s222 + $0x18] sm:$0xff]
        %v269 = vld [vmem:[%s222 + $0x20] sm:$0xff]
        %v270 = vld [vmem:[%s222 + $0x28] sm:$0xff]
        %v271 = vld [vmem:[%s222 + $0x30] sm:$0xff]
        %v272 = vld [vmem:[%s222 + $0x38] sm:$0xff]
        %v273 = vld [vmem:[%s231] sm:$0xff]
        %v274 = vld [vmem:[%s231 + $0x8] sm:$0xff]
        %v275 = vld [vmem:[%s231 + $0x10] sm:$0xff]
        %v276 = vld [vmem:[%s231 + $0x18] sm:$0xff]
        %v277 = vld [vmem:[%s231 + $0x20] sm:$0xff]
        %v278 = vld [vmem:[%s231 + $0x28] sm:$0xff]
        %v279 = vld [vmem:[%s231 + $0x30] sm:$0xff]
        %v280 = vld [vmem:[%s231 + $0x38] sm:$0xff]
        %v281 = vld [vmem:[#allocation8] sm:$0xff]
        %v282 = vld [vmem:[#allocation8 + $0x8] sm:$0xff]
        %s283 = sld [smem:[#allocation2]]
        %v286 = vlaneseq
        %v287 = vshrl.u32 %v286, 7
        %v288 = vsub.s32 0, %v287
        %v289 = vrot.slane %v281, %v288
        %v290 = vlaneseq
        %v291 = vshrl.u32 %v290, 7
        %v292 = vsub.s32 2, %v291
        %v293 = vrot.slane %v281, %v292
        %v294 = vlaneseq
        %v295 = vshrl.u32 %v294, 7
        %v296 = vsub.s32 4, %v295
        %v297 = vrot.slane %v281, %v296
        %v298 = vlaneseq
        %v299 = vshrl.u32 %v298, 7
        %v300 = vsub.s32 6, %v299
        %v301 = vrot.slane %v281, %v300
        %v302 = vlaneseq
        %v303 = vshrl.u32 %v302, 7
        %v304 = vsub.s32 0, %v303
        %v305 = vrot.slane %v282, %v304
        %v306 = vlaneseq
        %v307 = vshrl.u32 %v306, 7
        %v308 = vsub.s32 2, %v307
        %v309 = vrot.slane %v282, %v308
        %v310 = vlaneseq
        %v311 = vshrl.u32 %v310, 7
        %v312 = vsub.s32 4, %v311
        %v313 = vrot.slane %v282, %v312
        %v314 = vlaneseq
        %v315 = vshrl.u32 %v314, 7
        %v316 = vsub.s32 6, %v315
        %v317 = vrot.slane %v282, %v316
        %v326 = vlaneseq
        %v327 = vshrl.u32 %v326, 7
        %v328 = vsub.s32 0, %v327
        %v329 = vrot.slane %v289, %v328
        %v330 = vlaneseq
        %v331 = vshrl.u32 %v330, 7
        %v332 = vsub.s32 0, %v331
        %v333 = vrot.slane %v293, %v332
        %v334 = vlaneseq
        %v335 = vshrl.u32 %v334, 7
        %v336 = vsub.s32 0, %v335
        %v337 = vrot.slane %v297, %v336
        %v338 = vlaneseq
        %v339 = vshrl.u32 %v338, 7
        %v340 = vsub.s32 0, %v339
        %v341 = vrot.slane %v301, %v340
        %v342 = vlaneseq
        %v343 = vshrl.u32 %v342, 7
        %v344 = vsub.s32 0, %v343
        %v345 = vrot.slane %v305, %v344
        %v346 = vlaneseq
        %v347 = vshrl.u32 %v346, 7
        %v348 = vsub.s32 0, %v347
        %v349 = vrot.slane %v309, %v348
        %v350 = vlaneseq
        %v351 = vshrl.u32 %v350, 7
        %v352 = vsub.s32 0, %v351
        %v353 = vrot.slane %v313, %v352
        %v354 = vlaneseq
        %v355 = vshrl.u32 %v354, 7
        %v356 = vsub.s32 0, %v355
        %v357 = vrot.slane %v317, %v356
        %v358 = vmul.f32 %v265, %v329
        %v359 = vmul.f32 %v266, %v333
        %v360 = vmul.f32 %v267, %v337
        %v361 = vmul.f32 %v268, %v341
        %v362 = vmul.f32 %v269, %v345
        %v363 = vmul.f32 %v270, %v349
        %v364 = vmul.f32 %v271, %v353
        %v365 = vmul.f32 %v272, %v357
        %v366 = vlaneseq
        %v367 = vshrl.u32 %v366, 7
        %v368 = vsub.s32 1, %v367
        %v369 = vrot.slane %v281, %v368
        %v370 = vlaneseq
        %v371 = vshrl.u32 %v370, 7
        %v372 = vsub.s32 3, %v371
        %v373 = vrot.slane %v281, %v372
        %v374 = vlaneseq
        %v375 = vshrl.u32 %v374, 7
        %v376 = vsub.s32 5, %v375
        %v377 = vrot.slane %v281, %v376
        %v378 = vlaneseq
        %v379 = vshrl.u32 %v378, 7
        %v380 = vsub.s32 7, %v379
        %v381 = vrot.slane %v281, %v380
        %v382 = vlaneseq
        %v383 = vshrl.u32 %v382, 7
        %v384 = vsub.s32 1, %v383
        %v385 = vrot.slane %v282, %v384
        %v386 = vlaneseq
        %v387 = vshrl.u32 %v386, 7
        %v388 = vsub.s32 3, %v387
        %v389 = vrot.slane %v282, %v388
        %v390 = vlaneseq
        %v391 = vshrl.u32 %v390, 7
        %v392 = vsub.s32 5, %v391
        %v393 = vrot.slane %v282, %v392
        %v394 = vlaneseq
        %v395 = vshrl.u32 %v394, 7
        %v396 = vsub.s32 7, %v395
        %v397 = vrot.slane %v282, %v396
        %v406 = vlaneseq
        %v407 = vshrl.u32 %v406, 7
        %v408 = vsub.s32 1, %v407
        %v409 = vrot.slane %v369, %v408
        %v410 = vlaneseq
        %v411 = vshrl.u32 %v410, 7
        %v412 = vsub.s32 1, %v411
        %v413 = vrot.slane %v373, %v412
        %v414 = vlaneseq
        %v415 = vshrl.u32 %v414, 7
        %v416 = vsub.s32 1, %v415
        %v417 = vrot.slane %v377, %v416
        %v418 = vlaneseq
        %v419 = vshrl.u32 %v418, 7
        %v420 = vsub.s32 1, %v419
        %v421 = vrot.slane %v381, %v420
        %v422 = vlaneseq
        %v423 = vshrl.u32 %v422, 7
        %v424 = vsub.s32 1, %v423
        %v425 = vrot.slane %v385, %v424
        %v426 = vlaneseq
        %v427 = vshrl.u32 %v426, 7
        %v428 = vsub.s32 1, %v427
        %v429 = vrot.slane %v389, %v428
        %v430 = vlaneseq
        %v431 = vshrl.u32 %v430, 7
        %v432 = vsub.s32 1, %v431
        %v433 = vrot.slane %v393, %v432
        %v434 = vlaneseq
        %v435 = vshrl.u32 %v434, 7
        %v436 = vsub.s32 1, %v435
        %v437 = vrot.slane %v397, %v436
        %v438 = vmul.f32 %v273, %v409
        %v439 = vmul.f32 %v274, %v413
        %v440 = vmul.f32 %v275, %v417
        %v441 = vmul.f32 %v276, %v421
        %v442 = vmul.f32 %v277, %v425
        %v443 = vmul.f32 %v278, %v429
        %v444 = vmul.f32 %v279, %v433
        %v445 = vmul.f32 %v280, %v437
        %v446 = vadd.f32 %v358, %v438
        %v447 = vadd.f32 %v359, %v439
        %v448 = vadd.f32 %v360, %v440
        %v449 = vadd.f32 %v361, %v441
        %v450 = vadd.f32 %v362, %v442
        %v451 = vadd.f32 %v363, %v443
        %v452 = vadd.f32 %v364, %v444
        %v453 = vadd.f32 %v365, %v445
        %v454 = vadd.f32 %v446, %v447
        %v455 = vadd.f32 %v454, %v448
        %v456 = vadd.f32 %v455, %v449
        %v457 = vadd.f32 %v456, %v450
        %v458 = vadd.f32 %v457, %v451
        %v459 = vadd.f32 %v458, %v452
        %v460 = vadd.f32 %v459, %v453
        %461 = vadd.xlane.f32.xlu0 %v460
        %v462 = vpop.xlane.xlu0 %461
        %v463 = vstv %s283
        %v464 = vadd.f32 %v462, %v463
        %v465 = vxor.u32 %v464, 2147483648
        %v466 = vmul.f32 %v465, 1.442695
        %v467 = vpow.pop %v466
        %v468 = vadd.f32 %v467, 1.0
        %v469 = vrcp.pop %v468
        %v470 = vmul.f32 1.0, %v469
        %v471 = vsub.f32 %v265, %v273
        %v472 = vsub.f32 %v266, %v274
        %v473 = vsub.f32 %v267, %v275
        %v474 = vsub.f32 %v268, %v276
        %v475 = vsub.f32 %v269, %v277
        %v476 = vsub.f32 %v270, %v278
        %v477 = vsub.f32 %v271, %v279
        %v478 = vsub.f32 %v272, %v280
        %v479 = vmul.f32 %v470, %v471
        %v480 = vmul.f32 %v470, %v472
        %v481 = vmul.f32 %v470, %v473
        %v482 = vmul.f32 %v470, %v474
        %v483 = vmul.f32 %v470, %v475
        %v484 = vmul.f32 %v470, %v476
        %v485 = vmul.f32 %v470, %v477
        %v486 = vmul.f32 %v470, %v478
        %v487 = vadd.f32 %v273, %v479
        %v488 = vadd.f32 %v274, %v480
        %v489 = vadd.f32 %v275, %v481
        %v490 = vadd.f32 %v276, %v482
        %v491 = vadd.f32 %v277, %v483
        %v492 = vadd.f32 %v278, %v484
        %v493 = vadd.f32 %v279, %v485
        %v494 = vadd.f32 %v280, %v486
        %495 = vst [vmem:[%s264] sm:$0xff] %v487
        %496 = vst [vmem:[%s264 + $0x8] sm:$0xff] %v488
        %497 = vst [vmem:[%s264 + $0x10] sm:$0xff] %v489
        %498 = vst [vmem:[%s264 + $0x18] sm:$0xff] %v490
        %499 = vst [vmem:[%s264 + $0x20] sm:$0xff] %v491
        %500 = vst [vmem:[%s264 + $0x28] sm:$0xff] %v492
        %501 = vst [vmem:[%s264 + $0x30] sm:$0xff] %v493
        %502 = vst [vmem:[%s264 + $0x38] sm:$0xff] %v494
        %s503 = sand.u32 %s127, 1
        %s504 = scalar_lea.sflag [#allocation5], %s503
        %s505 = sand.u32 %s127, 1
        %s506 = smul.addr %s505, 64
        %s507 = scalar_lea.vmem [#allocation9], %s506
        // Predicated region
        $region49: #{tpu_custom_call.1} parent=35 // pred_check
          %p508 = pneg %p137
        $region50: #{tpu_custom_call.1} parent=35 // pred_check_branch
          %510 = sbr.rel (%p508) target = $region52
        $region51: #{tpu_custom_call.1} parent=35 // pred_region
          %s512 = ssub.s32 1024, 1024
          %513 = vsyncadd %s504, %s512
          %s514 = smul.addr %s25, 8
          %s515 = smul.addr %s514, 128
          %s516 = scalar_lea.hbm %s4, %s515
          %s518 = sshll.u32 %s507, 4
          %s519 = int_to_ptr.vmem [resolvable:$true] %s518
          %521 = dma.vmem_to_hbm [thread:$0]  %s519, 1024, %s516, %s504
        $region52: #{tpu_custom_call.1} parent=35 // pred_fallthru
          _
      $region36: #{tpu_custom_call.1} parent=5 // pred_fallthru
        _
      %p522 = scmp.le.s32.totalorder 2, %s20
      // Predicated region
      $region53: #{tpu_custom_call.1} parent=5 // pred_check
        %p523 = pneg %p522
      $region54: #{tpu_custom_call.1} parent=5 // pred_check_branch
        %525 = sbr.rel (%p523) target = $region56
      $region55: #{tpu_custom_call.1} parent=5 // pred_region
        %s526 = ssub.s32 %s20, 2
        // Predicated region
        $region57: #{tpu_custom_call.1} parent=55 // pred_check
          %p527 = pneg %p143
        $region58: #{tpu_custom_call.1} parent=55 // pred_check_branch
          %529 = sbr.rel (%p527) target = $region60
        $region59: #{tpu_custom_call.1} parent=55 // pred_region
          %s530 = sand.u32 %s128, 1
          %s531 = scalar_lea.sflag [#allocation5], %s530
          %s532 = sand.u32 %s128, 1
          %s533 = smul.addr %s532, 64
          %s534 = scalar_lea.vmem [#allocation9], %s533
          %535 = dma.done %s531, 1024
        $region60: #{tpu_custom_call.1} parent=55 // pred_fallthru
          _
      $region56: #{tpu_custom_call.1} parent=5 // pred_fallthru
        _
    $region6: #{tpu_custom_call.1} parent=1 // loop_footer
      %s24 = sadd.s32 1, %s20
    $region7: #{tpu_custom_call.1} parent=1 // loop_footer_branch
      %19 = sbr.rel target = $region3
    $region8: #{tpu_custom_call.1} parent=1 // loop_exit
      _
    %536 = vsyncpa [#allocation4], 1
    %s537 = scalar_lea.sflag [#allocation4], 1
    %538 = vsyncpa %s537, 1
    %539 = vsyncpa [#allocation7], 1
    %s540 = scalar_lea.sflag [#allocation7], 1
    %541 = vsyncpa %s540, 1
    %542 = vsyncpa [#allocation5], 1
    %s543 = scalar_lea.sflag [#allocation5], 1
    %544 = vsyncpa %s543, 1

</llo_original>
